<compile_context>
chip_gen: v7x
topology: tpu7x:2x2x1
jax: 0.10.0
libtpu: 0.0.40
codegen_flags: <defaults>
</compile_context>

<pallas_src>
import math

import jax
import jax.numpy as jnp
from jax.experimental import pallas as pl
from jax.experimental.pallas import tpu as pltpu


# ---------------------------------------------------------------------------
# Kernel bodies
# ---------------------------------------------------------------------------

def _make_kernel(G, N, lane_dense, use_scratch):
    """Build the per-grid-step body.

    lane_dense=True  : output block is (TM, G*N)  (heads folded into lanes).
    lane_dense=False : output block is (G, TM, TN).
    use_scratch=True : accumulate into an f32 VMEM scratch, cast at finalize.
    use_scratch=False: accumulate directly into the (already f32) output
                       block, which is resident across the K grid axis.
    """

    def kernel(x_ref, y_ref, o_ref, *scratch):
        acc_ref = scratch[0] if use_scratch else o_ref
        k = pl.program_id(3)

        @pl.when(k == 0)
        def _init():
            acc_ref[...] = jnp.zeros_like(acc_ref)

        if lane_dense:
            # Unrolled per-head dots; each head writes a static lane slice of
            # the (TM, G*N) accumulator so the HBM writeback is lane-dense.
            for g in range(G):
                acc_ref[:, g * N:(g + 1) * N] += jnp.dot(
                    x_ref[g], y_ref[g], preferred_element_type=jnp.float32
                ).astype(acc_ref.dtype)
        else:
            acc_ref[...] += jnp.einsum(
                "gmk,gkn->gmn",
                x_ref[...],
                y_ref[...],
                preferred_element_type=jnp.float32,
            ).astype(acc_ref.dtype)

        if use_scratch:
            @pl.when(k == pl.num_programs(3) - 1)
            def _finalize():
                o_ref[...] = acc_ref[...].astype(o_ref.dtype)

    return kernel


# ---------------------------------------------------------------------------
# Planning helpers
# ---------------------------------------------------------------------------

def _tile_options(dim, max_tile, full_up_to):
    """Legal tile sizes for `dim`, largest first.

    Full-dim blocks are always legal (satisfy the (8,128) rule); otherwise
    tiles must be 128-multiples that divide the dim.
    """
    opts = []
    if dim <= full_up_to:
        opts.append(dim)
    t = (min(max_tile, dim) // 128) * 128
    while t >= 128:
        if dim % t == 0 and t not in opts:
            opts.append(t)
        t -= 128
    if not opts:
        # Huge, non-128-divisible dim: full-dim fallback (guarded by the
        # VMEM-budget check in the wrapper, which falls back to XLA).
        opts.append(dim)
    return sorted(set(opts), reverse=True)


def _per_head_bytes(tm, tn, tk, xb, yb, ob, use_scratch):
    per = (
        2 * tm * tk * xb       # x block, double buffered
        + 2 * tk * tn * yb     # y block, double buffered
        + 2 * tm * tn * ob     # out block, double buffered
    )
    if use_scratch:
        per += tm * tn * 4     # f32 accumulator
    return per


def _plan_tiles(M, N, K, xb, yb, ob, use_scratch, budget):
    """Re-use-aware tile choice: shrink TK first, then TM, then TN.

    x is re-read ceil(N/TN) times and y ceil(M/TM) times, so wide TM/TN cut
    HBM re-read traffic the most; TK only needs 256-512 to hide DMA.
    """
    tn_opts = _tile_options(N, 512, 1024)
    tm_opts = _tile_options(M, 512, 1024)
    tk_opts = _tile_options(K, 512, 512)
    for tn in tn_opts:
        for tm in tm_opts:
            for tk in tk_opts:
                if _per_head_bytes(tm, tn, tk, xb, yb, ob, use_scratch) <= budget:
                    return tm, tn, tk
    return tm_opts[-1], tn_opts[-1], tk_opts[-1]


def _pick_group(BH, per_head_fp, budget, other_parallel_steps, g_cap=None):
    """Largest divisor of BH fitting the budget and the parallel-extent cap."""
    g_max = max(1, budget // max(1, per_head_fp))
    if g_cap is not None:
        g_max = min(g_max, g_cap)
    # Keep >= 2 parallel grid steps so v7x's two TensorCores both get work.
    if other_parallel_steps < 2 and BH >= 2:
        g_max = min(g_max, BH // 2)
    g_max = max(1, g_max)
    best = 1
    for d in range(1, BH + 1):
        if BH % d == 0 and d <= g_max:
            best = d
    return best


def _vmem_budget():
    """(working-set budget, vmem_limit_bytes), generation-aware."""
    try:
        info = pltpu.get_tpu_info()
        cap = int(getattr(info, "vmem_capacity_bytes", 64 * 1024 * 1024))
    except Exception:
        cap = 64 * 1024 * 1024  # assume the smallest (v7x-like) if query fails
    if cap >= 100 * 1024 * 1024:                       # v5e / v6e: 128 MiB
        return 56 * 1024 * 1024, 100 * 1024 * 1024
    return 22 * 1024 * 1024, 48 * 1024 * 1024          # v7x: 64 MiB physical


# ---------------------------------------------------------------------------
# Public wrapper
# ---------------------------------------------------------------------------

def bilinear_matmul_epsilon(x, y, epsilon=1e-6):
    """Forward pass of BilinearMatMulEpsilon: batched matmul(x, y).

    x: [..., M, K], y: [..., K, N] -> [..., M, N]. epsilon is unused in the
    forward pass (it only affects the custom LRP backward rule).
    """
    # TODO(synk): the epsilon-stabilized LRP relevance rule only rewrites the
    # backward pass; the forward computation is a plain matmul.
    del epsilon

    assert x.ndim >= 2 and x.ndim == y.ndim, "rank mismatch"
    *bx, M, K = x.shape
    *by, K2, N = y.shape
    assert K == K2 and tuple(bx) == tuple(by), "incompatible batched matmul shapes"

    batch_shape = tuple(bx)
    BH = math.prod(batch_shape) if batch_shape else 1

    out_dtype = jnp.result_type(x.dtype, y.dtype)
    x2 = x.reshape(BH, M, K)
    y2 = y.reshape(BH, K, N)

    x_bytes = jnp.dtype(x.dtype).itemsize
    y_bytes = jnp.dtype(y.dtype).itemsize
    o_bytes = jnp.dtype(out_dtype).itemsize
    use_scratch = jnp.dtype(out_dtype) != jnp.dtype(jnp.float32)

    budget, vmem_limit = _vmem_budget()
    TM, TN, TK = _plan_tiles(M, N, K, x_bytes, y_bytes, o_bytes, use_scratch, budget)
    per_head_fp = _per_head_bytes(TM, TN, TK, x_bytes, y_bytes, o_bytes, use_scratch)

    if per_head_fp > budget:
        # Degenerate tiling (huge non-128-divisible dims) would blow VMEM;
        # let XLA's batched gemm handle it instead of failing to compile.
        return jnp.matmul(x, y).astype(out_dtype)

    # Lane-dense output: fold heads into the lane dim when N is narrow.
    lane_dense = (N < 128) and (BH > 1) and (TN == N)
    g_cap = max(1, 512 // N) if lane_dense else None   # bounds kernel unrolling
    other_parallel = (M // TM) * (N // TN)
    G = _pick_group(BH, per_head_fp, budget, other_parallel, g_cap)
    lane_dense = lane_dense and G > 1

    kernel = _make_kernel(G, N, lane_dense, use_scratch)
    grid = (BH // G, M // TM, N // TN, K // TK)

    if lane_dense:
        out_shape = jax.ShapeDtypeStruct((BH // G, M, G * N), out_dtype)
        out_spec = pl.BlockSpec((None, TM, G * N), lambda b, i, j, k: (b, i, 0))
        acc_shape = (TM, G * N)
    else:
        out_shape = jax.ShapeDtypeStruct((BH, M, N), out_dtype)
        out_spec = pl.BlockSpec((G, TM, TN), lambda b, i, j, k: (b, i, j))
        acc_shape = (G, TM, TN)

    in_specs = [
        pl.BlockSpec((G, TM, TK), lambda b, i, j, k: (b, i, k)),
        pl.BlockSpec((G, TK, TN), lambda b, i, j, k: (b, k, j)),
    ]
    scratch_shapes = [pltpu.VMEM(acc_shape, jnp.float32)] if use_scratch else []

    # Actual HBM traffic: x re-read ceil(N/TN) times, y re-read ceil(M/TM).
    n_reads_x = -(-N // TN)
    n_reads_y = -(-M // TM)
    cost = pl.CostEstimate(
        flops=int(2 * BH * M * N * K),
        transcendentals=0,
        bytes_accessed=int(
            BH * M * K * x_bytes * n_reads_x
            + BH * K * N * y_bytes * n_reads_y
            + BH * M * N * o_bytes
        ),
    )

    # TODO(synk): for memory-bound shapes, sweeping pipeline_mode=pl.Buffered(3)
    # on the x/y in_specs can hide exposed DMA on the K loop (few % to ~15%).
    out = pl.pallas_call(
        kernel,
        out_shape=out_shape,
        grid_spec=pltpu.PrefetchScalarGridSpec(
            num_scalar_prefetch=0,
            grid=grid,
            in_specs=in_specs,
            out_specs=out_spec,
            scratch_shapes=scratch_shapes,
        ),
        compiler_params=pltpu.CompilerParams(
            dimension_semantics=("parallel", "parallel", "parallel", "arbitrary"),
            vmem_limit_bytes=vmem_limit,
        ),
        cost_estimate=cost,
    )(x2, y2)

    if lane_dense:
        # (NB, M, G*N) -> (NB, M, G, N) -> (NB, G, M, N) -> (BH, M, N)
        out = (
            out.reshape(BH // G, M, G, N)
            .transpose(0, 2, 1, 3)
            .reshape(BH, M, N)
        )

    return out.reshape(*batch_shape, M, N)


# ---------------------------------------------------------------------------
# Self-test
# ---------------------------------------------------------------------------

def _rel_fro_err(a, b):
    return float(jnp.linalg.norm((a - b).ravel()) / (jnp.linalg.norm(b.ravel()) + 1e-30))


if __name__ == "__main__":
    key = jax.random.PRNGKey(0)
    kx, ky, kx2, ky2 = jax.random.split(key, 4)

    # Small attention-style 4-D shapes (lane-dense output path, N < 128).
    B, H, M, K, N = 2, 4, 16, 32, 16
    x = jax.random.normal(kx, (B, H, M, K), dtype=jnp.float32)
    y = jax.random.normal(ky, (B, H, K, N), dtype=jnp.float32)

    out = jax.block_until_ready(bilinear_matmul_epsilon(x, y))
    ref = jnp.einsum("bhmk,bhkn->bhmn", x, y, precision=jax.lax.Precision.HIGHEST)
    assert out.shape == (B, H, M, N)
    err1 = _rel_fro_err(out, ref)
    assert err1 < 1e-2, f"lane-dense-path mismatch: rel_fro_err={err1}"

    # Larger shapes exercising the tiled path (K-axis accumulation over 2 steps).
    B2, H2, M2, K2, N2 = 1, 2, 256, 1024, 256
    x2 = jax.random.normal(kx2, (B2, H2, M2, K2), dtype=jnp.float32)
    y2 = jax.random.normal(ky2, (B2, H2, K2, N2), dtype=jnp.float32)

    out2 = jax.block_until_ready(bilinear_matmul_epsilon(x2, y2))
    ref2 = jnp.einsum("bhmk,bhkn->bhmn", x2, y2, precision=jax.lax.Precision.HIGHEST)
    err2 = _rel_fro_err(out2, ref2)
    assert err2 < 1e-2, f"tiled-path mismatch: rel_fro_err={err2}"

    print("KERNEL_OK")
</pallas_src>

<mosaic_0001>
module attributes {stable_mosaic.version = 11 : i64} {
  func.func @kernel(%arg0: i32, %arg1: i32, %arg2: i32, %arg3: i32, %arg4: memref<4x16x32xf32, #tpu.memory_space<vmem>>, %arg5: memref<4x32x16xf32, #tpu.memory_space<vmem>>, %arg6: memref<1x16x64xf32, #tpu.memory_space<vmem>>) attributes {dimension_semantics = [#tpu.dimension_semantics<parallel>, #tpu.dimension_semantics<parallel>, #tpu.dimension_semantics<parallel>, #tpu.dimension_semantics<arbitrary>], iteration_bounds = array<i64: 2, 1, 1, 1>, scalar_prefetch = 0 : i64, scratch_operands = 0 : i64, tpu.core_type = #tpu.core_type<tc>, window_params = [{transform_indices = @transform_0, window_bounds = array<i64: 4, 16, 32>}, {transform_indices = @transform_1, window_bounds = array<i64: 4, 32, 16>}, {transform_indices = @transform_2, window_bounds = array<i64: 1, 16, 64>}]} {
    %c0_i32 = arith.constant 0 : i32
    %0 = arith.cmpi eq, %arg3, %c0_i32 : i32
    %1 = arith.extui %0 : i1 to i32
    %c0_i32_0 = arith.constant 0 : i32
    %2 = arith.cmpi ne, %1, %c0_i32_0 : i32
    scf.if %2 {
      %cst_45 = arith.constant 0.000000e+00 : f32
      %47 = vector.broadcast %cst_45 : f32 to vector<16x64xf32>
      %c0_46 = arith.constant 0 : index
      %c0_47 = arith.constant 0 : index
      %c0_48 = arith.constant 0 : index
      %48 = vector.load %arg6[%c0_46, %c0_47, %c0_48] : memref<1x16x64xf32, #tpu.memory_space<vmem>>, vector<1x16x64xf32>
      %49 = vector.shape_cast %48 : vector<1x16x64xf32> to vector<16x64xf32>
      %50 = vector.shape_cast %47 : vector<16x64xf32> to vector<1x16x64xf32>
      tpu.vector_store %arg6[%c0_46, %c0_47, %c0_48], %50 {strides = array<i32>} : memref<1x16x64xf32, #tpu.memory_space<vmem>>, vector<1x16x64xf32>,
    } else {
    }
    %c0 = arith.constant 0 : index
    %c0_1 = arith.constant 0 : index
    %c0_2 = arith.constant 0 : index
    %3 = vector.load %arg6[%c0, %c0_1, %c0_2] : memref<1x16x64xf32, #tpu.memory_space<vmem>>, vector<1x16x16xf32>
    %4 = vector.shape_cast %3 : vector<1x16x16xf32> to vector<16x16xf32>
    %c0_3 = arith.constant 0 : index
    %c0_4 = arith.constant 0 : index
    %c0_5 = arith.constant 0 : index
    %5 = vector.load %arg4[%c0_3, %c0_4, %c0_5] : memref<4x16x32xf32, #tpu.memory_space<vmem>>, vector<1x16x32xf32>
    %6 = vector.shape_cast %5 : vector<1x16x32xf32> to vector<16x32xf32>
    %c0_6 = arith.constant 0 : index
    %c0_7 = arith.constant 0 : index
    %c0_8 = arith.constant 0 : index
    %7 = vector.load %arg5[%c0_6, %c0_7, %c0_8] : memref<4x32x16xf32, #tpu.memory_space<vmem>>, vector<1x32x16xf32>
    %8 = vector.shape_cast %7 : vector<1x32x16xf32> to vector<32x16xf32>
    %cst = arith.constant dense<0.000000e+00> : vector<16x16xf32>
    %9 = tpu.matmul %6, %8, %cst {dimension_numbers = #tpu.dot_dimension_numbers<[1], [0], [0], [1], [0, 0, 1, 1], [], []>} : vector<16x32xf32>, vector<32x16xf32>, vector<16x16xf32> -> vector<16x16xf32>
    %10 = arith.addf %4, %9 : vector<16x16xf32>
    %c0_9 = arith.constant 0 : index
    %c0_10 = arith.constant 0 : index
    %c0_11 = arith.constant 0 : index
    %11 = vector.load %arg6[%c0_9, %c0_10, %c0_11] : memref<1x16x64xf32, #tpu.memory_space<vmem>>, vector<1x16x16xf32>
    %12 = vector.shape_cast %11 : vector<1x16x16xf32> to vector<16x16xf32>
    %13 = vector.shape_cast %10 : vector<16x16xf32> to vector<1x16x16xf32>
    tpu.vector_store %arg6[%c0_9, %c0_10, %c0_11], %13 {strides = array<i32>} : memref<1x16x64xf32, #tpu.memory_space<vmem>>, vector<1x16x16xf32>,
    %c0_12 = arith.constant 0 : index
    %c0_13 = arith.constant 0 : index
    %c16 = arith.constant 16 : index
    %14 = vector.load %arg6[%c0_12, %c0_13, %c16] : memref<1x16x64xf32, #tpu.memory_space<vmem>>, vector<1x16x16xf32>
    %15 = vector.shape_cast %14 : vector<1x16x16xf32> to vector<16x16xf32>
    %c1 = arith.constant 1 : index
    %c0_14 = arith.constant 0 : index
    %c0_15 = arith.constant 0 : index
    %16 = vector.load %arg4[%c1, %c0_14, %c0_15] : memref<4x16x32xf32, #tpu.memory_space<vmem>>, vector<1x16x32xf32>
    %17 = vector.shape_cast %16 : vector<1x16x32xf32> to vector<16x32xf32>
    %c1_16 = arith.constant 1 : index
    %c0_17 = arith.constant 0 : index
    %c0_18 = arith.constant 0 : index
    %18 = vector.load %arg5[%c1_16, %c0_17, %c0_18] : memref<4x32x16xf32, #tpu.memory_space<vmem>>, vector<1x32x16xf32>
    %19 = vector.shape_cast %18 : vector<1x32x16xf32> to vector<32x16xf32>
    %cst_19 = arith.constant dense<0.000000e+00> : vector<16x16xf32>
    %20 = tpu.matmul %17, %19, %cst_19 {dimension_numbers = #tpu.dot_dimension_numbers<[1], [0], [0], [1], [0, 0, 1, 1], [], []>} : vector<16x32xf32>, vector<32x16xf32>, vector<16x16xf32> -> vector<16x16xf32>
    %21 = arith.addf %15, %20 : vector<16x16xf32>
    %c0_20 = arith.constant 0 : index
    %c0_21 = arith.constant 0 : index
    %c16_22 = arith.constant 16 : index
    %22 = vector.load %arg6[%c0_20, %c0_21, %c16_22] : memref<1x16x64xf32, #tpu.memory_space<vmem>>, vector<1x16x16xf32>
    %23 = vector.shape_cast %22 : vector<1x16x16xf32> to vector<16x16xf32>
    %24 = vector.shape_cast %21 : vector<16x16xf32> to vector<1x16x16xf32>
    tpu.vector_store %arg6[%c0_20, %c0_21, %c16_22], %24 {strides = array<i32>} : memref<1x16x64xf32, #tpu.memory_space<vmem>>, vector<1x16x16xf32>,
    %c0_23 = arith.constant 0 : index
    %c0_24 = arith.constant 0 : index
    %c32 = arith.constant 32 : index
    %25 = vector.load %arg6[%c0_23, %c0_24, %c32] : memref<1x16x64xf32, #tpu.memory_space<vmem>>, vector<1x16x16xf32>
    %26 = vector.shape_cast %25 : vector<1x16x16xf32> to vector<16x16xf32>
    %c2 = arith.constant 2 : index
    %c0_25 = arith.constant 0 : index
    %c0_26 = arith.constant 0 : index
    %27 = vector.load %arg4[%c2, %c0_25, %c0_26] : memref<4x16x32xf32, #tpu.memory_space<vmem>>, vector<1x16x32xf32>
    %28 = vector.shape_cast %27 : vector<1x16x32xf32> to vector<16x32xf32>
    %c2_27 = arith.constant 2 : index
    %c0_28 = arith.constant 0 : index
    %c0_29 = arith.constant 0 : index
    %29 = vector.load %arg5[%c2_27, %c0_28, %c0_29] : memref<4x32x16xf32, #tpu.memory_space<vmem>>, vector<1x32x16xf32>
    %30 = vector.shape_cast %29 : vector<1x32x16xf32> to vector<32x16xf32>
    %cst_30 = arith.constant dense<0.000000e+00> : vector<16x16xf32>
    %31 = tpu.matmul %28, %30, %cst_30 {dimension_numbers = #tpu.dot_dimension_numbers<[1], [0], [0], [1], [0, 0, 1, 1], [], []>} : vector<16x32xf32>, vector<32x16xf32>, vector<16x16xf32> -> vector<16x16xf32>
    %32 = arith.addf %26, %31 : vector<16x16xf32>
    %c0_31 = arith.constant 0 : index
    %c0_32 = arith.constant 0 : index
    %c32_33 = arith.constant 32 : index
    %33 = vector.load %arg6[%c0_31, %c0_32, %c32_33] : memref<1x16x64xf32, #tpu.memory_space<vmem>>, vector<1x16x16xf32>
    %34 = vector.shape_cast %33 : vector<1x16x16xf32> to vector<16x16xf32>
    %35 = vector.shape_cast %32 : vector<16x16xf32> to vector<1x16x16xf32>
    tpu.vector_store %arg6[%c0_31, %c0_32, %c32_33], %35 {strides = array<i32>} : memref<1x16x64xf32, #tpu.memory_space<vmem>>, vector<1x16x16xf32>,
    %c0_34 = arith.constant 0 : index
    %c0_35 = arith.constant 0 : index
    %c48 = arith.constant 48 : index
    %36 = vector.load %arg6[%c0_34, %c0_35, %c48] : memref<1x16x64xf32, #tpu.memory_space<vmem>>, vector<1x16x16xf32>
    %37 = vector.shape_cast %36 : vector<1x16x16xf32> to vector<16x16xf32>
    %c3 = arith.constant 3 : index
    %c0_36 = arith.constant 0 : index
    %c0_37 = arith.constant 0 : index
    %38 = vector.load %arg4[%c3, %c0_36, %c0_37] : memref<4x16x32xf32, #tpu.memory_space<vmem>>, vector<1x16x32xf32>
    %39 = vector.shape_cast %38 : vector<1x16x32xf32> to vector<16x32xf32>
    %c3_38 = arith.constant 3 : index
    %c0_39 = arith.constant 0 : index
    %c0_40 = arith.constant 0 : index
    %40 = vector.load %arg5[%c3_38, %c0_39, %c0_40] : memref<4x32x16xf32, #tpu.memory_space<vmem>>, vector<1x32x16xf32>
    %41 = vector.shape_cast %40 : vector<1x32x16xf32> to vector<32x16xf32>
    %cst_41 = arith.constant dense<0.000000e+00> : vector<16x16xf32>
    %42 = tpu.matmul %39, %41, %cst_41 {dimension_numbers = #tpu.dot_dimension_numbers<[1], [0], [0], [1], [0, 0, 1, 1], [], []>} : vector<16x32xf32>, vector<32x16xf32>, vector<16x16xf32> -> vector<16x16xf32>
    %43 = arith.addf %37, %42 : vector<16x16xf32>
    %c0_42 = arith.constant 0 : index
    %c0_43 = arith.constant 0 : index
    %c48_44 = arith.constant 48 : index
    %44 = vector.load %arg6[%c0_42, %c0_43, %c48_44] : memref<1x16x64xf32, #tpu.memory_space<vmem>>, vector<1x16x16xf32>
    %45 = vector.shape_cast %44 : vector<1x16x16xf32> to vector<16x16xf32>
    %46 = vector.shape_cast %43 : vector<16x16xf32> to vector<1x16x16xf32>
    tpu.vector_store %arg6[%c0_42, %c0_43, %c48_44], %46 {strides = array<i32>} : memref<1x16x64xf32, #tpu.memory_space<vmem>>, vector<1x16x16xf32>,
    return
  }
  func.func @transform_0(%arg0: i32, %arg1: i32, %arg2: i32, %arg3: i32) -> (i32, i32, i32) {
    %c0_i32 = arith.constant 0 : i32
    return %arg0, %arg1, %arg3 : i32, i32, i32
  }
  func.func @transform_1(%arg0: i32, %arg1: i32, %arg2: i32, %arg3: i32) -> (i32, i32, i32) {
    %c0_i32 = arith.constant 0 : i32
    return %arg0, %arg3, %arg2 : i32, i32, i32
  }
  func.func @transform_2(%arg0: i32, %arg1: i32, %arg2: i32, %arg3: i32) -> (i32, i32, i32) {
    %c0_i32 = arith.constant 0 : i32
    %c0_i32_0 = arith.constant 0 : i32
    return %arg0, %arg1, %c0_i32 : i32, i32, i32
  }
}

</mosaic_0001>

<llo_original>
// kernel: tpu_custom_call.1
$region0: #{tpu_custom_call.1}
  #allocation0 [shape = 'u32[]', space=smem, size = 0x4, offset = 0x4, fixed_abs, tag = 'smem constant byte address 0x4 - core index']
  #allocation1 [shape = 'u32[144,128]{1,0:T(1,128)}', space=vmem, size = 0x12000, scoped, tag = 'internal scratch']
  %s0 = inlined_call_operand.vmem [shape: f32[8,16,32], index: 0, kind: input, shape index: {}]
  %s1 = inlined_call_operand.vmem [shape: f32[8,32,16], index: 1, kind: input, shape index: {}]
  %s2 = inlined_call_operand.hbm [shape: f32[2,16,64], index: 2, kind: output, shape index: {}]
  %s3 = sld [smem:[#allocation0]]
  $region45: #{tpu_custom_call.1} parent=0
    _
  %s5 = ssub.s32 1, %s3
  %s6 = scalar_select 0, %s5, %s3
  $region1: #{tpu_custom_call.1} parent=0
    #allocation2 [shape = 'u8[16384]{0}', space=vmem, size = 0x4000, scoped, tag = 'output window, operand 0']
    #allocation3 [shape = 's32[2]{0}', space=sflag, size = 0x8, scoped, tag = 'scoped memory for tpu_custom_call.1']
    %7 = vsyncpa [#allocation3], 0
    %s8 = scalar_lea.sflag [#allocation3], 1
    %9 = vsyncpa %s8, 0
    loop: start=0, step=1, limit=4
    $region2: #{tpu_custom_call.1} parent=1 // loop_pre_header
      _
    $region3: #{tpu_custom_call.1} parent=1 // loop_header
      %s11 = sphi 0, %s15
      %p12 = scmp.ge.s32.totalorder %s11, 4
      %s18 = sphi 0, %s44
      %s19 = sphi 0, %s40
      %s20 = sphi 0, %s36
      %s21 = sphi 0, %s32
      %s22 = sphi 0, %s18
      %s23 = sphi 0, %s19
      %s24 = sphi 0, %s20
      %s25 = sphi 0, %s21
      %s26 = sphi 0, %s22
      %s27 = sphi 0, %s23
      %s28 = sphi 0, %s24
      %s29 = sphi 0, %s25
      %s51 = sphi 0, %s53
      %s54 = sphi 0, %s51
      %s55 = sphi 0, %s54
      %s71 = sphi 0, %s55
      %s81 = sphi 0, %s83
      %s84 = sphi 0, %s81
      %s85 = sphi 0, %s84
      %s101 = sphi 0, %s85
      %s109 = sphi 0, %s111
      %s112 = sphi 0, %s109
      %s113 = sphi 0, %s112
      %s129 = sphi 0, %s113
    $region4: #{tpu_custom_call.1} parent=1 // loop_header_branch
      %14 = sbr.rel (%p12) target = $region8
    $region5: #{tpu_custom_call.1} parent=1 // loop_body
      %s16 = ssub.s32 %s11, 1
      %s17 = ssub.s32 %s11, 2
      %s30 = sadd.s32 1, %s21
      %p31 = scmp.ge.s32.totalorder %s30, 1
      %s32 = scalar_select %p31, 0, %s30
      %s33 = sadd.s32 1, %s20
      %s34 = scalar_select %p31, %s33, %s20
      %p35 = scmp.ge.s32.totalorder %s34, 1
      %s36 = scalar_select %p35, 0, %s34
      %s37 = sadd.s32 1, %s19
      %s38 = scalar_select %p35, %s37, %s19
      %p39 = scmp.ge.s32.totalorder %s38, 1
      %s40 = scalar_select %p39, 0, %s38
      %s41 = sadd.s32 1, %s18
      %s42 = scalar_select %p39, %s41, %s18
      %p43 = scmp.ge.s32.totalorder %s42, 2
      %s44 = scalar_select %p43, 0, %s42
      %s45 = ssub.s32 %s18, %s44
      %s46 = ssub.s32 %s19, %s40
      %s47 = sor.u32 %s45, %s46
      %s48 = ssub.s32 %s21, %s32
      %s49 = sor.u32 %s47, %s48
      %p50 = scmp.eq.s32.totalorder %s49, 0
      %s52 = sadd.s32 %s51, 1
      %s53 = scalar_select %p50, %s51, %s52
      %p56 = pneg %p50
      %p57 = scmp.eq.s32.totalorder %s11, 1
      %p58 = por %p56, %p57
      %p59 = scmp.ne.s32.totalorder %s51, %s54
      %p60 = scmp.eq.s32.totalorder %s11, 0
      %p61 = por %p59, %p60
      %p62 = scmp.ne.s32.totalorder %s51, %s54
      %p63 = scmp.eq.s32.totalorder %s16, 1
      %p64 = por %p62, %p63
      %p65 = scmp.ne.s32.totalorder %s54, %s55
      %p66 = scmp.eq.s32.totalorder %s16, 0
      %p67 = por %p65, %p66
      %p68 = scmp.ne.s32.totalorder %s54, %s55
      %p69 = scmp.eq.s32.totalorder %s17, 1
      %p70 = por %p68, %p69
      %p72 = scmp.ne.s32.totalorder %s55, %s71
      %p73 = scmp.eq.s32.totalorder %s17, 0
      %p74 = por %p72, %p73
      %s75 = ssub.s32 %s18, %s44
      %s76 = ssub.s32 %s21, %s32
      %s77 = sor.u32 %s75, %s76
      %s78 = ssub.s32 %s20, %s36
      %s79 = sor.u32 %s77, %s78
      %p80 = scmp.eq.s32.totalorder %s79, 0
      %s82 = sadd.s32 %s81, 1
      %s83 = scalar_select %p80, %s81, %s82
      %p86 = pneg %p80
      %p87 = scmp.eq.s32.totalorder %s11, 1
      %p88 = por %p86, %p87
      %p89 = scmp.ne.s32.totalorder %s81, %s84
      %p90 = scmp.eq.s32.totalorder %s11, 0
      %p91 = por %p89, %p90
      %p92 = scmp.ne.s32.totalorder %s81, %s84
      %p93 = scmp.eq.s32.totalorder %s16, 1
      %p94 = por %p92, %p93
      %p95 = scmp.ne.s32.totalorder %s84, %s85
      %p96 = scmp.eq.s32.totalorder %s16, 0
      %p97 = por %p95, %p96
      %p98 = scmp.ne.s32.totalorder %s84, %s85
      %p99 = scmp.eq.s32.totalorder %s17, 1
      %p100 = por %p98, %p99
      %p102 = scmp.ne.s32.totalorder %s85, %s101
      %p103 = scmp.eq.s32.totalorder %s17, 0
      %p104 = por %p102, %p103
      %s105 = ssub.s32 %s18, %s44
      %s106 = ssub.s32 %s19, %s40
      %s107 = sor.u32 %s105, %s106
      %p108 = scmp.eq.s32.totalorder %s107, 0
      %s110 = sadd.s32 %s109, 1
      %s111 = scalar_select %p108, %s109, %s110
      %p114 = pneg %p108
      %p115 = scmp.eq.s32.totalorder %s11, 1
      %p116 = por %p114, %p115
      %p117 = scmp.ne.s32.totalorder %s109, %s112
      %p118 = scmp.eq.s32.totalorder %s11, 0
      %p119 = por %p117, %p118
      %p120 = scmp.ne.s32.totalorder %s109, %s112
      %p121 = scmp.eq.s32.totalorder %s16, 1
      %p122 = por %p120, %p121
      %p123 = scmp.ne.s32.totalorder %s112, %s113
      %p124 = scmp.eq.s32.totalorder %s16, 0
      %p125 = por %p123, %p124
      %p126 = scmp.ne.s32.totalorder %s112, %s113
      %p127 = scmp.eq.s32.totalorder %s17, 1
      %p128 = por %p126, %p127
      %p130 = scmp.ne.s32.totalorder %s113, %s129
      %p131 = scmp.eq.s32.totalorder %s17, 0
      %p132 = por %p130, %p131
      %p133 = scmp.le.s32.totalorder 1, %s11
      %p134 = scmp.lt.s32.totalorder %s11, 3
      %p135 = pnand %p133, %p134
      %p136 = pneg %p135
      // Predicated region
      $region9: #{tpu_custom_call.1} parent=5 // pred_check
        _
      $region10: #{tpu_custom_call.1} parent=5 // pred_check_branch
        %138 = sbr.rel (%p135) target = $region12
      $region11: #{tpu_custom_call.1} parent=5 // pred_region
        %s139 = ssub.s32 %s11, 1
      $region12: #{tpu_custom_call.1} parent=5 // pred_fallthru
        _
      %p140 = scmp.lt.s32.totalorder %s11, 2
      // Predicated region
      $region13: #{tpu_custom_call.1} parent=5 // pred_check
        %p141 = pneg %p140
      $region14: #{tpu_custom_call.1} parent=5 // pred_check_branch
        %143 = sbr.rel (%p141) target = $region16
      $region15: #{tpu_custom_call.1} parent=5 // pred_region
        // Predicated region
        $region17: #{tpu_custom_call.1} parent=15 // pred_check
          %p144 = pneg %p61
        $region18: #{tpu_custom_call.1} parent=15 // pred_check_branch
          %146 = sbr.rel (%p144) target = $region20
        $region19: #{tpu_custom_call.1} parent=15 // pred_region
          %s147 = smul.u32 4, %s18
          %s148 = smul.u32 2, %s19
          %p149 = scmp.lt.s32.totalorder %s147, 7
          %s150 = scalar_select %p149, %s147, 7
          %p151 = scmp.lt.s32.totalorder %s148, 1
          %s152 = scalar_select %p151, %s148, 1
          %p153 = scmp.lt.s32.totalorder %s21, 0
          %s154 = scalar_select %p153, %s21, 0
          %s155 = sadd.s32 %s154, %s152
          %s156 = smul.addr %s150, 2
          %s157 = sadd.s32 %s155, %s156
          %s158 = smul.addr %s157, 8
          %s159 = scalar_lea.vmem %s0, %s158
          %s160 = smul.u32 4, %s18
          %s161 = smul.u32 2, %s19
        $region20: #{tpu_custom_call.1} parent=15 // pred_fallthru
          _
        // Predicated region
        $region21: #{tpu_custom_call.1} parent=15 // pred_check
          %p162 = pneg %p91
        $region22: #{tpu_custom_call.1} parent=15 // pred_check_branch
          %164 = sbr.rel (%p162) target = $region24
        $region23: #{tpu_custom_call.1} parent=15 // pred_region
          %s165 = smul.u32 4, %s18
          %s166 = smul.u32 4, %s21
          %p167 = scmp.lt.s32.totalorder %s165, 7
          %s168 = scalar_select %p167, %s165, 7
          %p169 = scmp.lt.s32.totalorder %s166, 3
          %s170 = scalar_select %p169, %s166, 3
          %p171 = scmp.lt.s32.totalorder %s20, 0
          %s172 = scalar_select %p171, %s20, 0
          %s173 = sadd.s32 %s172, %s170
          %s174 = smul.addr %s168, 4
          %s175 = sadd.s32 %s173, %s174
          %s176 = smul.addr %s175, 8
          %s177 = scalar_lea.vmem %s1, %s176
          %s178 = smul.u32 4, %s18
          %s179 = smul.u32 4, %s21
        $region24: #{tpu_custom_call.1} parent=15 // pred_fallthru
          _
      $region16: #{tpu_custom_call.1} parent=5 // pred_fallthru
        _
      %p180 = scmp.le.s32.totalorder 1, %s11
      %p181 = scmp.lt.s32.totalorder %s11, 3
      %p182 = pnand %p180, %p181
      %p183 = pneg %p182
      // Predicated region
      $region25: #{tpu_custom_call.1} parent=5 // pred_check
        _
      $region26: #{tpu_custom_call.1} parent=5 // pred_check_branch
        %185 = sbr.rel (%p182) target = $region28
      $region27: #{tpu_custom_call.1} parent=5 // pred_region
        %s186 = ssub.s32 %s11, 1
        %s187 = smul.u32 4, %s22
        %s188 = smul.u32 2, %s23
        %p189 = scmp.lt.s32.totalorder %s187, 7
        %s190 = scalar_select %p189, %s187, 7
        %p191 = scmp.lt.s32.totalorder %s188, 1
        %s192 = scalar_select %p191, %s188, 1
        %p193 = scmp.lt.s32.totalorder %s25, 0
        %s194 = scalar_select %p193, %s25, 0
        %s195 = sadd.s32 %s194, %s192
        %s196 = smul.addr %s190, 2
        %s197 = sadd.s32 %s195, %s196
        %s198 = smul.addr %s197, 8
        %s199 = scalar_lea.vmem %s0, %s198
        %p200 = pneg %p67
        %p201 = pneg %p64
        %s202 = smul.u32 4, %s22
        %s203 = smul.u32 4, %s25
        %p204 = scmp.lt.s32.totalorder %s202, 7
        %s205 = scalar_select %p204, %s202, 7
        %p206 = scmp.lt.s32.totalorder %s203, 3
        %s207 = scalar_select %p206, %s203, 3
        %p208 = scmp.lt.s32.totalorder %s24, 0
        %s209 = scalar_select %p208, %s24, 0
        %s210 = sadd.s32 %s209, %s207
        %s211 = smul.addr %s205, 4
        %s212 = sadd.s32 %s210, %s211
        %s213 = smul.addr %s212, 8
        %s214 = scalar_lea.vmem %s1, %s213
        %p215 = pneg %p97
        %p216 = pneg %p94
        %p217 = pneg %p125
        %p218 = pneg %p122
        %s219 = sand.u32 %s112, 1
        %s220 = scalar_lea.sflag [#allocation3], %s219
        %s221 = sand.u32 %s112, 1
        %s222 = smul.addr %s221, 16
        %s223 = scalar_lea.vmem [#allocation2], %s222
        %s224 = smul.u32 4, %s22
        %s225 = smul.u32 2, %s23
        %p226 = scmp.lt.s32.totalorder %s224, 7
        %s227 = scalar_select %p226, %s224, 7
        %p228 = scmp.lt.s32.totalorder %s225, 1
        %s229 = scalar_select %p228, %s225, 1
        %p230 = scmp.lt.s32.totalorder %s25, 0
        %s231 = scalar_select %p230, %s25, 0
        %s232 = sadd.s32 %s231, %s229
        %s233 = smul.addr %s227, 2
        %s234 = sadd.s32 %s232, %s233
        %s235 = smul.addr %s234, 8
        %s236 = scalar_lea.vmem %s0, %s235
        %s237 = smul.u32 4, %s22
        %s238 = smul.u32 2, %s23
        %s239 = smul.u32 4, %s22
        %s240 = smul.u32 4, %s25
        %p241 = scmp.lt.s32.totalorder %s239, 7
        %s242 = scalar_select %p241, %s239, 7
        %p243 = scmp.lt.s32.totalorder %s240, 3
        %s244 = scalar_select %p243, %s240, 3
        %p245 = scmp.lt.s32.totalorder %s24, 0
        %s246 = scalar_select %p245, %s24, 0
        %s247 = sadd.s32 %s246, %s244
        %s248 = smul.addr %s242, 4
        %s249 = sadd.s32 %s247, %s248
        %s250 = smul.addr %s249, 8
        %s251 = scalar_lea.vmem %s1, %s250
        %s252 = smul.u32 4, %s22
        %s253 = smul.u32 4, %s25
        %s254 = smul.u32 2, %s23
        %p255 = scmp.eq.s32.totalorder %s25, 0
        // Predicated region
        $region29: #{tpu_custom_call.1} parent=27 // pred_check
          %p256 = pneg %p255
        $region30: #{tpu_custom_call.1} parent=27 // pred_check_branch
          %258 = sbr.rel (%p256) target = $region32
        $region31: #{tpu_custom_call.1} parent=27 // pred_region
          %vm259 = vcmask 523264
          %260 = vst.msk [vmem:[%s223] sm:$0xff] %vm259, 0.0
          %261 = vst.msk [vmem:[%s223 + $0x8] sm:$0xff] %vm259, 0.0
        $region32: #{tpu_custom_call.1} parent=27 // pred_fallthru
          _
        %v262 = vld [vmem:[%s223] sm:$0xff]
        %v263 = vld [vmem:[%s223 + $0x8] sm:$0xff]
        %v264 = vld [vmem:[%s236] sm:$0xff]
        %v265 = vld [vmem:[%s236 + $0x8] sm:$0xff]
        %v266 = vld [vmem:[%s251] sm:$0xff]
        %v267 = vld [vmem:[%s251 + $0x8] sm:$0xff]
        %v268 = vld [vmem:[%s251 + $0x10] sm:$0xff]
        %v269 = vld [vmem:[%s251 + $0x18] sm:$0xff]
        %vm270 = vcmask 261120
        %v272 = vsel %vm270, %v264, 0
        %v275 = vsel %vm270, %v265, 0
        %277 = vmatprep.subr.mxu0 0.0
        %278 = vmatpush1.msra.mxu0 %v266
        %279 = vmatprep.subr.mxu0 0.0
        %280 = vmatpush1.msra.mxu0 %v267
        %281 = vmatprep.subr.mxu0 0.0
        %282 = vmatpush1.msra.mxu0 %v268
        %283 = vmatprep.subr.mxu0 0.0
        %284 = vmatpush1.msra.mxu0 %v269
        %285 = vmatprep.subr.mxu0 0.0
        %286 = vmatpush1.msra.mxu0 0.0
        %287 = vmatprep.subr.mxu0 0.0
        %288 = vmatpush1.msra.mxu0 0.0
        %289 = vmatprep.subr.mxu0 0.0
        %290 = vmatpush1.msra.mxu0 0.0
        %291 = vmatprep.subr.mxu0 0.0
        %292 = vmatpush1.msra.mxu0 0.0
        %293 = vmatprep.subr.mxu0 0.0
        %294 = vmatpush1.msra.mxu0 0.0
        %295 = vmatprep.subr.mxu0 0.0
        %296 = vmatpush1.msra.mxu0 0.0
        %297 = vmatprep.subr.mxu0 0.0
        %298 = vmatpush1.msra.mxu0 0.0
        %299 = vmatprep.subr.mxu0 0.0
        %300 = vmatpush1.msra.mxu0 0.0
        %301 = vmatprep.subr.mxu0 0.0
        %302 = vmatpush1.msra.mxu0 0.0
        %303 = vmatprep.subr.mxu0 0.0
        %304 = vmatpush1.msra.mxu0 0.0
        %305 = vmatprep.subr.mxu0 0.0
        %306 = vmatpush1.msra.mxu0 0.0
        %307 = vmatprep.subr.mxu0 0.0
        %308 = vmatpush1.msra.mxu0 0.0
        %309 = vmatprep.subr.mxu0 0.0
        %310 = vmatpush1.msra.mxu0 0.0
        %311 = vmatprep.subr.mxu0 0.0
        %312 = vmatpush1.msra.mxu0 0.0
        %313 = vmatprep.subr.mxu0 0.0
        %314 = vmatpush1.msra.mxu0 0.0
        %315 = vmatprep.subr.mxu0 0.0
        %316 = vmatpush1.msra.mxu0 0.0
        %317 = vmatprep.subr.mxu0 0.0
        %318 = vmatpush1.msra.mxu0 0.0
        %319 = vmatprep.subr.mxu0 0.0
        %320 = vmatpush1.msra.mxu0 0.0
        %321 = vmatprep.subr.mxu0 0.0
        %322 = vmatpush1.msra.mxu0 0.0
        %323 = vmatprep.subr.mxu0 0.0
        %324 = vmatpush1.msra.mxu0 0.0
        %325 = vmatprep.subr.mxu0 0.0
        %326 = vmatpush1.msra.mxu0 0.0
        %327 = vmatprep.subr.mxu0 0.0
        %328 = vmatpush1.msra.mxu0 0.0
        %329 = vmatprep.subr.mxu0 0.0
        %330 = vmatpush1.msra.mxu0 0.0
        %331 = vmatprep.subr.mxu0 0.0
        %332 = vmatpush1.msra.mxu0 0.0
        %333 = vmatprep.subr.mxu0 0.0
        %334 = vmatpush1.msra.mxu0 0.0
        %335 = vmatprep.subr.mxu0 0.0
        %336 = vmatpush1.msra.mxu0 0.0
        %337 = vmatprep.subr.mxu0 0.0
        %338 = vmatpush1.msra.mxu0 0.0
        %339 = vmatprep.subr.mxu0 0.0
        %340 = vmatpush1.msra.mxu0 0.0
        %341 = vmatprep.mubr.f32.mxu0 0.0
        %342 = vmatmul.mubr.f32.gmra.mrb[0].mxu0 %v272
        %v343 = vpop.f32.mrb[0].mxu0
        %v344 = vadd.f32 0.0, %v343
        %v345 = vpop.f32.mrb[0].mxu0
        %346 = vmatprep.mubr.f32.mxu0 0.0
        %347 = vmatmul.mubr.f32.gmra.mrb[0].mxu0 %v275
        %v348 = vpop.f32.mrb[0].mxu0
        %v349 = vadd.f32 0.0, %v348
        %v350 = vpop.f32.mrb[0].mxu0
        %351 = vdwg.mxu0
        %v352 = vadd.f32 %v262, %v344
        %v353 = vadd.f32 %v263, %v349
        %vm354 = vcmask 130048
        %355 = vst.msk [vmem:[%s223] sm:$0xff] %vm354, %v352
        %356 = vst.msk [vmem:[%s223 + $0x8] sm:$0xff] %vm354, %v353
        %v357 = vld [vmem:[%s223] sm:$0xff]
        %v358 = vld [vmem:[%s223 + $0x8] sm:$0xff]
        %s359 = scalar_lea.vmem %s236, 16
        %v360 = vld [vmem:[%s359] sm:$0xff]
        %v361 = vld [vmem:[%s359 + $0x8] sm:$0xff]
        %s362 = scalar_lea.vmem %s251, 32
        %v363 = vld [vmem:[%s362] sm:$0xff]
        %v364 = vld [vmem:[%s362 + $0x8] sm:$0xff]
        %v365 = vld [vmem:[%s362 + $0x10] sm:$0xff]
        %v366 = vld [vmem:[%s362 + $0x18] sm:$0xff]
        %v368 = vsel %vm270, %v360, 0
        %v371 = vsel %vm270, %v361, 0
        %373 = vmatprep.subr.mxu0 0.0
        %374 = vmatpush1.msra.mxu0 %v363
        %375 = vmatprep.subr.mxu0 0.0
        %376 = vmatpush1.msra.mxu0 %v364
        %377 = vmatprep.subr.mxu0 0.0
        %378 = vmatpush1.msra.mxu0 %v365
        %379 = vmatprep.subr.mxu0 0.0
        %380 = vmatpush1.msra.mxu0 %v366
        %381 = vmatprep.subr.mxu0 0.0
        %382 = vmatpush1.msra.mxu0 0.0
        %383 = vmatprep.subr.mxu0 0.0
        %384 = vmatpush1.msra.mxu0 0.0
        %385 = vmatprep.subr.mxu0 0.0
        %386 = vmatpush1.msra.mxu0 0.0
        %387 = vmatprep.subr.mxu0 0.0
        %388 = vmatpush1.msra.mxu0 0.0
        %389 = vmatprep.subr.mxu0 0.0
        %390 = vmatpush1.msra.mxu0 0.0
        %391 = vmatprep.subr.mxu0 0.0
        %392 = vmatpush1.msra.mxu0 0.0
        %393 = vmatprep.subr.mxu0 0.0
        %394 = vmatpush1.msra.mxu0 0.0
        %395 = vmatprep.subr.mxu0 0.0
        %396 = vmatpush1.msra.mxu0 0.0
        %397 = vmatprep.subr.mxu0 0.0
        %398 = vmatpush1.msra.mxu0 0.0
        %399 = vmatprep.subr.mxu0 0.0
        %400 = vmatpush1.msra.mxu0 0.0
        %401 = vmatprep.subr.mxu0 0.0
        %402 = vmatpush1.msra.mxu0 0.0
        %403 = vmatprep.subr.mxu0 0.0
        %404 = vmatpush1.msra.mxu0 0.0
        %405 = vmatprep.subr.mxu0 0.0
        %406 = vmatpush1.msra.mxu0 0.0
        %407 = vmatprep.subr.mxu0 0.0
        %408 = vmatpush1.msra.mxu0 0.0
        %409 = vmatprep.subr.mxu0 0.0
        %410 = vmatpush1.msra.mxu0 0.0
        %411 = vmatprep.subr.mxu0 0.0
        %412 = vmatpush1.msra.mxu0 0.0
        %413 = vmatprep.subr.mxu0 0.0
        %414 = vmatpush1.msra.mxu0 0.0
        %415 = vmatprep.subr.mxu0 0.0
        %416 = vmatpush1.msra.mxu0 0.0
        %417 = vmatprep.subr.mxu0 0.0
        %418 = vmatpush1.msra.mxu0 0.0
        %419 = vmatprep.subr.mxu0 0.0
        %420 = vmatpush1.msra.mxu0 0.0
        %421 = vmatprep.subr.mxu0 0.0
        %422 = vmatpush1.msra.mxu0 0.0
        %423 = vmatprep.subr.mxu0 0.0
        %424 = vmatpush1.msra.mxu0 0.0
        %425 = vmatprep.subr.mxu0 0.0
        %426 = vmatpush1.msra.mxu0 0.0
        %427 = vmatprep.subr.mxu0 0.0
        %428 = vmatpush1.msra.mxu0 0.0
        %429 = vmatprep.subr.mxu0 0.0
        %430 = vmatpush1.msra.mxu0 0.0
        %431 = vmatprep.subr.mxu0 0.0
        %432 = vmatpush1.msra.mxu0 0.0
        %433 = vmatprep.subr.mxu0 0.0
        %434 = vmatpush1.msra.mxu0 0.0
        %435 = vmatprep.subr.mxu0 0.0
        %436 = vmatpush1.msra.mxu0 0.0
        %437 = vmatprep.mubr.f32.mxu0 0.0
        %438 = vmatmul.mubr.f32.gmra.mrb[0].mxu0 %v368
        %v439 = vpop.f32.mrb[0].mxu0
        %v440 = vadd.f32 0.0, %v439
        %v441 = vpop.f32.mrb[0].mxu0
        %442 = vmatprep.mubr.f32.mxu0 0.0
        %443 = vmatmul.mubr.f32.gmra.mrb[0].mxu0 %v371
        %v444 = vpop.f32.mrb[0].mxu0
        %v445 = vadd.f32 0.0, %v444
        %v446 = vpop.f32.mrb[0].mxu0
        %447 = vdwg.mxu0
        %450 = vrot.lane.b32.xlu0 %v440, 16
        %v451 = vpop.permute.xlu0 %450
        %452 = vrot.lane.b32.xlu0 %v445, 16
        %v453 = vpop.permute.xlu0 %452
        %v456 = vadd.f32 %v357, %v451
        %v457 = vadd.f32 %v358, %v453
        %vm458 = vcmask 261248
        %459 = vst.msk [vmem:[%s223] sm:$0xff] %vm458, %v456
        %460 = vst.msk [vmem:[%s223 + $0x8] sm:$0xff] %vm458, %v457
        %v461 = vld [vmem:[%s223] sm:$0xff]
        %v462 = vld [vmem:[%s223 + $0x8] sm:$0xff]
        %s463 = scalar_lea.vmem %s236, 32
        %v464 = vld [vmem:[%s463] sm:$0xff]
        %v465 = vld [vmem:[%s463 + $0x8] sm:$0xff]
        %s466 = scalar_lea.vmem %s251, 64
        %v467 = vld [vmem:[%s466] sm:$0xff]
        %v468 = vld [vmem:[%s466 + $0x8] sm:$0xff]
        %v469 = vld [vmem:[%s466 + $0x10] sm:$0xff]
        %v470 = vld [vmem:[%s466 + $0x18] sm:$0xff]
        %v472 = vsel %vm270, %v464, 0
        %v475 = vsel %vm270, %v465, 0
        %477 = vmatprep.subr.mxu0 0.0
        %478 = vmatpush1.msra.mxu0 %v467
        %479 = vmatprep.subr.mxu0 0.0
        %480 = vmatpush1.msra.mxu0 %v468
        %481 = vmatprep.subr.mxu0 0.0
        %482 = vmatpush1.msra.mxu0 %v469
        %483 = vmatprep.subr.mxu0 0.0
        %484 = vmatpush1.msra.mxu0 %v470
        %485 = vmatprep.subr.mxu0 0.0
        %486 = vmatpush1.msra.mxu0 0.0
        %487 = vmatprep.subr.mxu0 0.0
        %488 = vmatpush1.msra.mxu0 0.0
        %489 = vmatprep.subr.mxu0 0.0
        %490 = vmatpush1.msra.mxu0 0.0
        %491 = vmatprep.subr.mxu0 0.0
        %492 = vmatpush1.msra.mxu0 0.0
        %493 = vmatprep.subr.mxu0 0.0
        %494 = vmatpush1.msra.mxu0 0.0
        %495 = vmatprep.subr.mxu0 0.0
        %496 = vmatpush1.msra.mxu0 0.0
        %497 = vmatprep.subr.mxu0 0.0
        %498 = vmatpush1.msra.mxu0 0.0
        %499 = vmatprep.subr.mxu0 0.0
        %500 = vmatpush1.msra.mxu0 0.0
        %501 = vmatprep.subr.mxu0 0.0
        %502 = vmatpush1.msra.mxu0 0.0
        %503 = vmatprep.subr.mxu0 0.0
        %504 = vmatpush1.msra.mxu0 0.0
        %505 = vmatprep.subr.mxu0 0.0
        %506 = vmatpush1.msra.mxu0 0.0
        %507 = vmatprep.subr.mxu0 0.0
        %508 = vmatpush1.msra.mxu0 0.0
        %509 = vmatprep.subr.mxu0 0.0
        %510 = vmatpush1.msra.mxu0 0.0
        %511 = vmatprep.subr.mxu0 0.0
        %512 = vmatpush1.msra.mxu0 0.0
        %513 = vmatprep.subr.mxu0 0.0
        %514 = vmatpush1.msra.mxu0 0.0
        %515 = vmatprep.subr.mxu0 0.0
        %516 = vmatpush1.msra.mxu0 0.0
        %517 = vmatprep.subr.mxu0 0.0
        %518 = vmatpush1.msra.mxu0 0.0
        %519 = vmatprep.subr.mxu0 0.0
        %520 = vmatpush1.msra.mxu0 0.0
        %521 = vmatprep.subr.mxu0 0.0
        %522 = vmatpush1.msra.mxu0 0.0
        %523 = vmatprep.subr.mxu0 0.0
        %524 = vmatpush1.msra.mxu0 0.0
        %525 = vmatprep.subr.mxu0 0.0
        %526 = vmatpush1.msra.mxu0 0.0
        %527 = vmatprep.subr.mxu0 0.0
        %528 = vmatpush1.msra.mxu0 0.0
        %529 = vmatprep.subr.mxu0 0.0
        %530 = vmatpush1.msra.mxu0 0.0
        %531 = vmatprep.subr.mxu0 0.0
        %532 = vmatpush1.msra.mxu0 0.0
        %533 = vmatprep.subr.mxu0 0.0
        %534 = vmatpush1.msra.mxu0 0.0
        %535 = vmatprep.subr.mxu0 0.0
        %536 = vmatpush1.msra.mxu0 0.0
        %537 = vmatprep.subr.mxu0 0.0
        %538 = vmatpush1.msra.mxu0 0.0
        %539 = vmatprep.subr.mxu0 0.0
        %540 = vmatpush1.msra.mxu0 0.0
        %541 = vmatprep.mubr.f32.mxu0 0.0
        %542 = vmatmul.mubr.f32.gmra.mrb[0].mxu0 %v472
        %v543 = vpop.f32.mrb[0].mxu0
        %v544 = vadd.f32 0.0, %v543
        %v545 = vpop.f32.mrb[0].mxu0
        %546 = vmatprep.mubr.f32.mxu0 0.0
        %547 = vmatmul.mubr.f32.gmra.mrb[0].mxu0 %v475
        %v548 = vpop.f32.mrb[0].mxu0
        %v549 = vadd.f32 0.0, %v548
        %v550 = vpop.f32.mrb[0].mxu0
        %551 = vdwg.mxu0
        %554 = vrot.lane.b32.xlu0 %v544, 32
        %v555 = vpop.permute.xlu0 %554
        %556 = vrot.lane.b32.xlu0 %v549, 32
        %v557 = vpop.permute.xlu0 %556
        %v560 = vadd.f32 %v461, %v555
        %v561 = vadd.f32 %v462, %v557
        %vm562 = vcmask 392448
        %563 = vst.msk [vmem:[%s223] sm:$0xff] %vm562, %v560
        %564 = vst.msk [vmem:[%s223 + $0x8] sm:$0xff] %vm562, %v561
        %v565 = vld [vmem:[%s223] sm:$0xff]
        %v566 = vld [vmem:[%s223 + $0x8] sm:$0xff]
        %s567 = scalar_lea.vmem %s236, 48
        %v568 = vld [vmem:[%s567] sm:$0xff]
        %v569 = vld [vmem:[%s567 + $0x8] sm:$0xff]
        %s570 = scalar_lea.vmem %s251, 96
        %v571 = vld [vmem:[%s570] sm:$0xff]
        %v572 = vld [vmem:[%s570 + $0x8] sm:$0xff]
        %v573 = vld [vmem:[%s570 + $0x10] sm:$0xff]
        %v574 = vld [vmem:[%s570 + $0x18] sm:$0xff]
        %v576 = vsel %vm270, %v568, 0
        %v579 = vsel %vm270, %v569, 0
        %581 = vmatprep.subr.mxu0 0.0
        %582 = vmatpush1.msra.mxu0 %v571
        %583 = vmatprep.subr.mxu0 0.0
        %584 = vmatpush1.msra.mxu0 %v572
        %585 = vmatprep.subr.mxu0 0.0
        %586 = vmatpush1.msra.mxu0 %v573
        %587 = vmatprep.subr.mxu0 0.0
        %588 = vmatpush1.msra.mxu0 %v574
        %589 = vmatprep.subr.mxu0 0.0
        %590 = vmatpush1.msra.mxu0 0.0
        %591 = vmatprep.subr.mxu0 0.0
        %592 = vmatpush1.msra.mxu0 0.0
        %593 = vmatprep.subr.mxu0 0.0
        %594 = vmatpush1.msra.mxu0 0.0
        %595 = vmatprep.subr.mxu0 0.0
        %596 = vmatpush1.msra.mxu0 0.0
        %597 = vmatprep.subr.mxu0 0.0
        %598 = vmatpush1.msra.mxu0 0.0
        %599 = vmatprep.subr.mxu0 0.0
        %600 = vmatpush1.msra.mxu0 0.0
        %601 = vmatprep.subr.mxu0 0.0
        %602 = vmatpush1.msra.mxu0 0.0
        %603 = vmatprep.subr.mxu0 0.0
        %604 = vmatpush1.msra.mxu0 0.0
        %605 = vmatprep.subr.mxu0 0.0
        %606 = vmatpush1.msra.mxu0 0.0
        %607 = vmatprep.subr.mxu0 0.0
        %608 = vmatpush1.msra.mxu0 0.0
        %609 = vmatprep.subr.mxu0 0.0
        %610 = vmatpush1.msra.mxu0 0.0
        %611 = vmatprep.subr.mxu0 0.0
        %612 = vmatpush1.msra.mxu0 0.0
        %613 = vmatprep.subr.mxu0 0.0
        %614 = vmatpush1.msra.mxu0 0.0
        %615 = vmatprep.subr.mxu0 0.0
        %616 = vmatpush1.msra.mxu0 0.0
        %617 = vmatprep.subr.mxu0 0.0
        %618 = vmatpush1.msra.mxu0 0.0
        %619 = vmatprep.subr.mxu0 0.0
        %620 = vmatpush1.msra.mxu0 0.0
        %621 = vmatprep.subr.mxu0 0.0
        %622 = vmatpush1.msra.mxu0 0.0
        %623 = vmatprep.subr.mxu0 0.0
        %624 = vmatpush1.msra.mxu0 0.0
        %625 = vmatprep.subr.mxu0 0.0
        %626 = vmatpush1.msra.mxu0 0.0
        %627 = vmatprep.subr.mxu0 0.0
        %628 = vmatpush1.msra.mxu0 0.0
        %629 = vmatprep.subr.mxu0 0.0
        %630 = vmatpush1.msra.mxu0 0.0
        %631 = vmatprep.subr.mxu0 0.0
        %632 = vmatpush1.msra.mxu0 0.0
        %633 = vmatprep.subr.mxu0 0.0
        %634 = vmatpush1.msra.mxu0 0.0
        %635 = vmatprep.subr.mxu0 0.0
        %636 = vmatpush1.msra.mxu0 0.0
        %637 = vmatprep.subr.mxu0 0.0
        %638 = vmatpush1.msra.mxu0 0.0
        %639 = vmatprep.subr.mxu0 0.0
        %640 = vmatpush1.msra.mxu0 0.0
        %641 = vmatprep.subr.mxu0 0.0
        %642 = vmatpush1.msra.mxu0 0.0
        %643 = vmatprep.subr.mxu0 0.0
        %644 = vmatpush1.msra.mxu0 0.0
        %645 = vmatprep.mubr.f32.mxu0 0.0
        %646 = vmatmul.mubr.f32.gmra.mrb[0].mxu0 %v576
        %v647 = vpop.f32.mrb[0].mxu0
        %v648 = vadd.f32 0.0, %v647
        %v649 = vpop.f32.mrb[0].mxu0
        %650 = vmatprep.mubr.f32.mxu0 0.0
        %651 = vmatmul.mubr.f32.gmra.mrb[0].mxu0 %v579
        %v652 = vpop.f32.mrb[0].mxu0
        %v653 = vadd.f32 0.0, %v652
        %v654 = vpop.f32.mrb[0].mxu0
        %655 = vdwg.mxu0
        %658 = vrot.lane.b32.xlu0 %v648, 48
        %v659 = vpop.permute.xlu0 %658
        %660 = vrot.lane.b32.xlu0 %v653, 48
        %v661 = vpop.permute.xlu0 %660
        %v664 = vadd.f32 %v565, %v659
        %v665 = vadd.f32 %v566, %v661
        %vm666 = vcmask 523648
        %667 = vst.msk [vmem:[%s223] sm:$0xff] %vm666, %v664
        %668 = vst.msk [vmem:[%s223 + $0x8] sm:$0xff] %vm666, %v665
        %s669 = sand.u32 %s112, 1
        %s670 = scalar_lea.sflag [#allocation3], %s669
        %s671 = sand.u32 %s112, 1
        %s672 = smul.addr %s671, 16
        %s673 = scalar_lea.vmem [#allocation2], %s672
        // Predicated region
        $region33: #{tpu_custom_call.1} parent=27 // pred_check
          %p674 = pneg %p122
        $region34: #{tpu_custom_call.1} parent=27 // pred_check_branch
          %676 = sbr.rel (%p674) target = $region36
        $region35: #{tpu_custom_call.1} parent=27 // pred_region
          %s677 = smul.u32 2, %s23
          %s679 = ssub.s32 256, 256
          %680 = vsyncadd %s670, %s679
          %s681 = smul.addr %s22, 2
          %s682 = sadd.s32 %s677, %s681
          %s683 = smul.addr %s682, 128
          %s684 = scalar_lea.hbm %s2, %s683
          %s685 = sshll.u32 %s673, 4
          %s686 = int_to_ptr.vmem [resolvable:$true] %s685
          %691 = dma.vmem_to_hbm [thread:$0]  %s686, 256, %s684, %s670, 128, 128, 8
        $region36: #{tpu_custom_call.1} parent=27 // pred_fallthru
          _
      $region28: #{tpu_custom_call.1} parent=5 // pred_fallthru
        _
      %p692 = scmp.le.s32.totalorder 2, %s11
      // Predicated region
      $region37: #{tpu_custom_call.1} parent=5 // pred_check
        %p693 = pneg %p692
      $region38: #{tpu_custom_call.1} parent=5 // pred_check_branch
        %695 = sbr.rel (%p693) target = $region40
      $region39: #{tpu_custom_call.1} parent=5 // pred_region
        %s696 = ssub.s32 %s11, 2
        // Predicated region
        $region41: #{tpu_custom_call.1} parent=39 // pred_check
          %p697 = pneg %p128
        $region42: #{tpu_custom_call.1} parent=39 // pred_check_branch
          %699 = sbr.rel (%p697) target = $region44
        $region43: #{tpu_custom_call.1} parent=39 // pred_region
          %s700 = sand.u32 %s113, 1
          %s701 = scalar_lea.sflag [#allocation3], %s700
          %s702 = sand.u32 %s113, 1
          %s703 = smul.addr %s702, 16
          %s704 = scalar_lea.vmem [#allocation2], %s703
          %705 = dma.done %s701, 256
        $region44: #{tpu_custom_call.1} parent=39 // pred_fallthru
          _
      $region40: #{tpu_custom_call.1} parent=5 // pred_fallthru
        _
    $region6: #{tpu_custom_call.1} parent=1 // loop_footer
      %s15 = sadd.s32 1, %s11
    $region7: #{tpu_custom_call.1} parent=1 // loop_footer_branch
      %10 = sbr.rel target = $region3
    $region8: #{tpu_custom_call.1} parent=1 // loop_exit
      _
    %706 = vsyncpa [#allocation3], 1
    %s707 = scalar_lea.sflag [#allocation3], 1
    %708 = vsyncpa %s707, 1

</llo_original>
